<compile_context>
chip_gen: v5e
topology: v5e:2x2
jax: 0.10.0
libtpu: 0.0.40
codegen_flags: <defaults>
</compile_context>

<pallas_src>
import jax
import jax.numpy as jnp
from jax.experimental import pallas as pl
from jax.experimental.pallas import tpu as pltpu


def _distmult_kernel(adj_ref, out_ref, w_ref, res_ref):
    # adj_ref: (1, 1, tile) int32 -- relation index per row (lane-dense)
    # out_ref: (tile, F)          -- activations
    # w_ref:   (A, F)             -- full DistMult weight table (VMEM resident)
    # res_ref: (tile, F)          -- result
    x = out_ref[...]
    w = w_ref[...]
    A = w_ref.shape[0]

    idx = jnp.transpose(adj_ref[0])            # (tile, 1): lane -> sublane relayout (XLU)
    idxb = jnp.broadcast_to(idx, x.shape)      # single hoisted lane-broadcast

    # A-way select gather: gathered[r, :] = w[idx[r], :]   (0 for out-of-range idx)
    gathered = jnp.where(idxb == 0, w[0:1, :], jnp.zeros((), dtype=w.dtype))
    for a in range(1, A):                      # A is small & static -> unrolled selects
        gathered = jnp.where(idxb == a, w[a:a + 1, :], gathered)

    res_ref[...] = gathered.astype(res_ref.dtype) * x.astype(res_ref.dtype)


def _default_tile_n():
    # Per-generation default: bigger tiles on v7x (3.2 TB/s HBM) to amortize the
    # fixed per-grid-step overhead; 2048 is already near-roofline on v5e/v6e.
    try:
        kind = jax.devices()[0].device_kind.lower()
    except Exception:
        return 2048
    if "v7" in kind or "7x" in kind:
        return 8192
    return 2048


def _choose_tile(n_rows, tile_n, n_feat):
    if n_rows <= 8:
        return n_rows                          # single block == full array (legal)
    tile = min(tile_n, (n_rows // 8) * 8)      # sublane multiple, never exceeds N
    # VMEM guard: keep one (tile, F) f32 block under ~4 MiB.
    cap = max(8, (4 * 1024 * 1024 // (4 * n_feat)) // 8 * 8)
    tile = min(tile, cap)
    # Keep >= ~8 grid steps on large inputs (pipeline depth / v7x two TensorCores),
    # but never shrink the tile below 512 rows for it.
    if n_rows >= 8 * 512:
        eighth = (((n_rows + 7) // 8) + 7) // 8 * 8
        tile = max(512, min(tile, eighth))
    return max(tile, 8)


def distmult_pred(out, taget_adj, weight, *, tile_n=None, donate_out=False):
    """out: (N, F) float, taget_adj: (N,) int, weight: (A, F) float -> (N, F)."""
    out = jnp.asarray(out)
    weight = jnp.asarray(weight)
    N, F = out.shape
    A, Fw = weight.shape
    assert F == Fw, "input_feature mismatch between out and weight"

    if tile_n is None:
        tile_n = _default_tile_n()
    tile = _choose_tile(N, tile_n, F)
    n_blocks = -(-N // tile)

    res_dtype = jnp.promote_types(out.dtype, weight.dtype)

    # Lane-dense index layout: pad ONLY the tiny index vector (zeros -> rows land in
    # the masked tail and never reach HBM) and reshape to (n_blocks, 1, tile) so each
    # grid step gets one contiguous (1, tile) int32 burst.
    adj = jnp.asarray(taget_adj).reshape(N).astype(jnp.int32)
    pad = n_blocks * tile - N
    if pad:
        adj = jnp.pad(adj, (0, pad))
    adj3 = adj.reshape(n_blocks, 1, tile)

    kwargs = {}
    if donate_out and out.dtype == res_dtype:
        # Reuse the activation HBM buffer for the result (caller must not reuse `out`).
        kwargs["input_output_aliases"] = {1: 0}

    return pl.pallas_call(
        _distmult_kernel,
        out_shape=jax.ShapeDtypeStruct((N, F), res_dtype),
        grid_spec=pltpu.PrefetchScalarGridSpec(
            num_scalar_prefetch=0,
            grid=(n_blocks,),
            in_specs=[
                pl.BlockSpec((1, 1, tile), lambda i: (i, 0, 0)),  # lane-dense indices
                pl.BlockSpec((tile, F), lambda i: (i, 0)),        # activations (partial tail OK)
                pl.BlockSpec((A, F), lambda i: (0, 0)),           # weight table, resident
            ],
            out_specs=pl.BlockSpec((tile, F), lambda i: (i, 0)),
        ),
        compiler_params=pltpu.CompilerParams(
            dimension_semantics=("parallel",)),
        **kwargs,
    )(adj3, out, weight)


if __name__ == "__main__":
    # Small shapes consistent with the module: adj_num=4, input_feature=128.
    # N=300 is deliberately NOT a multiple of any tile to exercise the masked tail.
    adj_num = 4
    input_feature = 128
    N = 300

    key = jax.random.PRNGKey(0)
    k_w, k_out, k_adj = jax.random.split(key, 3)

    # Deterministic parameter init (matches torch.nn.init.normal_: std normal).
    weight = jax.random.normal(k_w, (adj_num, input_feature), dtype=jnp.float32)
    out = jax.random.normal(k_out, (N, input_feature), dtype=jnp.float32)
    taget_adj = jax.random.randint(k_adj, (N,), 0, adj_num, dtype=jnp.int32)

    ref = weight[taget_adj] * out

    # Default (large-tile) path: partial last block, no activation padding.
    result = jax.block_until_ready(distmult_pred(out, taget_adj, weight))
    assert result.shape == ref.shape and result.dtype == ref.dtype
    assert jnp.allclose(result, ref, atol=1e-5, rtol=1e-5)

    # Small-tile path: multi-step grid (3 steps) with a masked partial tail.
    result2 = jax.block_until_ready(distmult_pred(out, taget_adj, weight, tile_n=128))
    assert jnp.allclose(result2, ref, atol=1e-5, rtol=1e-5)

    print("KERNEL_OK")
</pallas_src>

<mosaic_0001>
module attributes {stable_mosaic.version = 11 : i64} {
  func.func @_distmult_kernel(%arg0: i32, %arg1: memref<1x1x296xi32, #tpu.memory_space<vmem>>, %arg2: memref<296x128xf32, #tpu.memory_space<vmem>>, %arg3: memref<4x128xf32, #tpu.memory_space<vmem>>, %arg4: memref<296x128xf32, #tpu.memory_space<vmem>>) attributes {dimension_semantics = [#tpu.dimension_semantics<parallel>], iteration_bounds = array<i64: 2>, scalar_prefetch = 0 : i64, scratch_operands = 0 : i64, tpu.core_type = #tpu.core_type<tc>, window_params = [{transform_indices = @transform_0, window_bounds = array<i64: 1, 1, 296>}, {transform_indices = @transform_1, window_bounds = array<i64: 296, 128>}, {pipeline_mode = #tpu.pipeline_mode<synchronous>, transform_indices = @transform_2, window_bounds = array<i64: 4, 128>}, {transform_indices = @transform_3, window_bounds = array<i64: 296, 128>}]} {
    %c0 = arith.constant 0 : index
    %c0_0 = arith.constant 0 : index
    %0 = vector.load %arg2[%c0, %c0_0] : memref<296x128xf32, #tpu.memory_space<vmem>>, vector<296x128xf32>
    %c0_1 = arith.constant 0 : index
    %c0_2 = arith.constant 0 : index
    %1 = vector.load %arg3[%c0_1, %c0_2] : memref<4x128xf32, #tpu.memory_space<vmem>>, vector<4x128xf32>
    %c0_3 = arith.constant 0 : index
    %c0_4 = arith.constant 0 : index
    %c0_5 = arith.constant 0 : index
    %2 = vector.load %arg1[%c0_3, %c0_4, %c0_5] : memref<1x1x296xi32, #tpu.memory_space<vmem>>, vector<1x1x296xi32>
    %3 = vector.shape_cast %2 : vector<1x1x296xi32> to vector<1x296xi32>
    %4 = tpu.transpose %3, [1, 0] : vector<1x296xi32> -> vector<296x1xi32>
    %5 = vector.shape_cast %4 : vector<296x1xi32> to vector<296x1xi32>
    %6 = vector.broadcast %5 : vector<296x1xi32> to vector<296x128xi32>
    %c0_i32 = arith.constant 0 : i32
    %7 = vector.broadcast %c0_i32 : i32 to vector<296x128xi32>
    %8 = arith.cmpi eq, %6, %7 : vector<296x128xi32>
    %9 = vector.extract_strided_slice %1 {offsets = [0, 0], sizes = [1, 128], strides = [1, 1]} : vector<4x128xf32> to vector<1x128xf32>
    %cst = arith.constant 0.000000e+00 : f32
    %10 = vector.shape_cast %9 : vector<1x128xf32> to vector<1x128xf32>
    %11 = vector.broadcast %10 : vector<1x128xf32> to vector<296x128xf32>
    %12 = vector.broadcast %cst : f32 to vector<296x128xf32>
    %13 = arith.select %8, %11, %12 : vector<296x128xi1>, vector<296x128xf32>
    %c1_i32 = arith.constant 1 : i32
    %14 = vector.broadcast %c1_i32 : i32 to vector<296x128xi32>
    %15 = arith.cmpi eq, %6, %14 : vector<296x128xi32>
    %16 = vector.extract_strided_slice %1 {offsets = [1, 0], sizes = [1, 128], strides = [1, 1]} : vector<4x128xf32> to vector<1x128xf32>
    %17 = vector.shape_cast %16 : vector<1x128xf32> to vector<1x128xf32>
    %18 = vector.broadcast %17 : vector<1x128xf32> to vector<296x128xf32>
    %19 = arith.select %15, %18, %13 : vector<296x128xi1>, vector<296x128xf32>
    %c2_i32 = arith.constant 2 : i32
    %20 = vector.broadcast %c2_i32 : i32 to vector<296x128xi32>
    %21 = arith.cmpi eq, %6, %20 : vector<296x128xi32>
    %22 = vector.extract_strided_slice %1 {offsets = [2, 0], sizes = [1, 128], strides = [1, 1]} : vector<4x128xf32> to vector<1x128xf32>
    %23 = vector.shape_cast %22 : vector<1x128xf32> to vector<1x128xf32>
    %24 = vector.broadcast %23 : vector<1x128xf32> to vector<296x128xf32>
    %25 = arith.select %21, %24, %19 : vector<296x128xi1>, vector<296x128xf32>
    %c3_i32 = arith.constant 3 : i32
    %26 = vector.broadcast %c3_i32 : i32 to vector<296x128xi32>
    %27 = arith.cmpi eq, %6, %26 : vector<296x128xi32>
    %28 = vector.extract_strided_slice %1 {offsets = [3, 0], sizes = [1, 128], strides = [1, 1]} : vector<4x128xf32> to vector<1x128xf32>
    %29 = vector.shape_cast %28 : vector<1x128xf32> to vector<1x128xf32>
    %30 = vector.broadcast %29 : vector<1x128xf32> to vector<296x128xf32>
    %31 = arith.select %27, %30, %25 : vector<296x128xi1>, vector<296x128xf32>
    %32 = arith.mulf %31, %0 : vector<296x128xf32>
    %c0_6 = arith.constant 0 : index
    %c0_7 = arith.constant 0 : index
    %33 = vector.load %arg4[%c0_6, %c0_7] : memref<296x128xf32, #tpu.memory_space<vmem>>, vector<296x128xf32>
    tpu.vector_store %arg4[%c0_6, %c0_7], %32 {strides = array<i32>} : memref<296x128xf32, #tpu.memory_space<vmem>>, vector<296x128xf32>,
    return
  }
  func.func @transform_0(%arg0: i32) -> (i32, i32, i32) {
    %c0_i32 = arith.constant 0 : i32
    %c0_i32_0 = arith.constant 0 : i32
    %c0_i32_1 = arith.constant 0 : i32
    return %arg0, %c0_i32, %c0_i32_0 : i32, i32, i32
  }
  func.func @transform_1(%arg0: i32) -> (i32, i32) {
    %c0_i32 = arith.constant 0 : i32
    %c0_i32_0 = arith.constant 0 : i32
    return %arg0, %c0_i32 : i32, i32
  }
  func.func @transform_2(%arg0: i32) -> (i32, i32) {
    %c0_i32 = arith.constant 0 : i32
    %c0_i32_0 = arith.constant 0 : i32
    %c0_i32_1 = arith.constant 0 : i32
    return %c0_i32, %c0_i32_0 : i32, i32
  }
  func.func @transform_3(%arg0: i32) -> (i32, i32) {
    %c0_i32 = arith.constant 0 : i32
    %c0_i32_0 = arith.constant 0 : i32
    return %arg0, %c0_i32 : i32, i32
  }
}

</mosaic_0001>

<llo_original>
// kernel: tpu_custom_call.1
$region0: #{tpu_custom_call.1}
  #allocation0 [shape = 'u32[]', space=smem, size = 0x4, offset = 0x4, fixed_abs, tag = 'smem constant byte address 0x4 - core index']
  #allocation1 [shape = 'u32[72,128]{1,0:T(1,128)}', space=vmem, size = 0x9000, scoped, tag = 'internal scratch']
  %s0 = inlined_call_operand.hbm [shape: s32[2,1,296], index: 0, kind: input, shape index: {}]
  %s1 = inlined_call_operand.hbm [shape: f32[300,128], index: 1, kind: input, shape index: {}]
  %s2 = inlined_call_operand.hbm [shape: f32[4,128], index: 2, kind: input, shape index: {}]
  %s3 = inlined_call_operand.hbm [shape: f32[300,128], index: 3, kind: output, shape index: {}]
  %s4 = sld [smem:[#allocation0]]
  $region57: #{tpu_custom_call.1} parent=0
    _
  %s6 = ssub.s32 1, %s4
  %s7 = scalar_select 0, %s6, %s4
  $region1: #{tpu_custom_call.1} parent=0
    #allocation2 [shape = 'u8[3072]{0}', space=vmem, size = 0xc00, scoped, tag = 'input window, operand 0']
    #allocation3 [shape = 's32[2]{0}', space=sflag, size = 0x8, scoped, tag = 'scoped memory for tpu_custom_call.1']
    #allocation4 [shape = 's32[2]{0}', space=sflag, size = 0x8, scoped, tag = 'scoped memory for tpu_custom_call.1']
    #allocation5 [shape = 'u8[303104]{0}', space=vmem, size = 0x4a000, scoped, tag = 'input window, operand 1']
    #allocation6 [shape = 's32[2]{0}', space=sflag, size = 0x8, scoped, tag = 'scoped memory for tpu_custom_call.1']
    #allocation7 [shape = 'u8[2048]{0}', space=vmem, size = 0x800, scoped, tag = 'input window, operand 2, single buffered']
    #allocation8 [shape = 'u8[303104]{0}', space=vmem, size = 0x4a000, scoped, tag = 'output window, operand 0']
    %8 = vsyncpa [#allocation3], 0
    %s9 = scalar_lea.sflag [#allocation3], 1
    %10 = vsyncpa %s9, 0
    %11 = vsyncpa [#allocation6], 0
    %s12 = scalar_lea.sflag [#allocation6], 1
    %13 = vsyncpa %s12, 0
    %14 = vsyncpa [#allocation4], 0
    %s15 = scalar_lea.sflag [#allocation4], 1
    %16 = vsyncpa %s15, 0
    loop: start=0, step=1, limit=4
    $region2: #{tpu_custom_call.1} parent=1 // loop_pre_header
      _
    $region3: #{tpu_custom_call.1} parent=1 // loop_header
      %s18 = sphi 0, %s22
      %p19 = scmp.ge.s32.totalorder %s18, 4
      %s28 = sphi 0, %s30
      %s31 = sphi 0, %s28
      %s32 = sphi 0, %s31
      %s48 = sphi 0, %s32
      %s54 = sphi 0, %s56
      %s57 = sphi 0, %s54
      %s58 = sphi 0, %s57
      %s74 = sphi 0, %s58
      %s78 = sphi 0, %s78
      %s80 = sphi 0, %s78
      %s81 = sphi 0, %s80
      %s95 = sphi 0, %s81
      %s101 = sphi 0, %s103
      %s104 = sphi 0, %s101
      %s105 = sphi 0, %s104
      %s121 = sphi 0, %s105
    $region4: #{tpu_custom_call.1} parent=1 // loop_header_branch
      %21 = sbr.rel (%p19) target = $region8
    $region5: #{tpu_custom_call.1} parent=1 // loop_body
      %s23 = ssub.s32 %s18, 1
      %s24 = ssub.s32 %s18, 2
      %s25 = sadd.s32 %s18, 1
      %s26 = ssub.s32 %s18, %s25
      %p27 = scmp.eq.s32.totalorder %s26, 0
      %s29 = sadd.s32 %s28, 1
      %s30 = scalar_select %p27, %s28, %s29
      %p33 = pneg %p27
      %p34 = scmp.eq.s32.totalorder %s18, 1
      %p35 = por %p33, %p34
      %p36 = scmp.ne.s32.totalorder %s28, %s31
      %p37 = scmp.eq.s32.totalorder %s18, 0
      %p38 = por %p36, %p37
      %p39 = scmp.ne.s32.totalorder %s28, %s31
      %p40 = scmp.eq.s32.totalorder %s23, 1
      %p41 = por %p39, %p40
      %p42 = scmp.ne.s32.totalorder %s31, %s32
      %p43 = scmp.eq.s32.totalorder %s23, 0
      %p44 = por %p42, %p43
      %p45 = scmp.ne.s32.totalorder %s31, %s32
      %p46 = scmp.eq.s32.totalorder %s24, 1
      %p47 = por %p45, %p46
      %p49 = scmp.ne.s32.totalorder %s32, %s48
      %p50 = scmp.eq.s32.totalorder %s24, 0
      %p51 = por %p49, %p50
      %s52 = ssub.s32 %s18, %s25
      %p53 = scmp.eq.s32.totalorder %s52, 0
      %s55 = sadd.s32 %s54, 1
      %s56 = scalar_select %p53, %s54, %s55
      %p59 = pneg %p53
      %p60 = scmp.eq.s32.totalorder %s18, 1
      %p61 = por %p59, %p60
      %p62 = scmp.ne.s32.totalorder %s54, %s57
      %p63 = scmp.eq.s32.totalorder %s18, 0
      %p64 = por %p62, %p63
      %p65 = scmp.ne.s32.totalorder %s54, %s57
      %p66 = scmp.eq.s32.totalorder %s23, 1
      %p67 = por %p65, %p66
      %p68 = scmp.ne.s32.totalorder %s57, %s58
      %p69 = scmp.eq.s32.totalorder %s23, 0
      %p70 = por %p68, %p69
      %p71 = scmp.ne.s32.totalorder %s57, %s58
      %p72 = scmp.eq.s32.totalorder %s24, 1
      %p73 = por %p71, %p72
      %p75 = scmp.ne.s32.totalorder %s58, %s74
      %p76 = scmp.eq.s32.totalorder %s24, 0
      %p77 = por %p75, %p76
      %s79 = sadd.s32 %s78, 1
      %p82 = scmp.eq.s32.totalorder %s18, 1
      %p83 = scmp.ne.s32.totalorder %s78, %s80
      %p84 = scmp.eq.s32.totalorder %s18, 0
      %p85 = por %p83, %p84
      %p86 = scmp.ne.s32.totalorder %s78, %s80
      %p87 = scmp.eq.s32.totalorder %s23, 1
      %p88 = por %p86, %p87
      %p89 = scmp.ne.s32.totalorder %s80, %s81
      %p90 = scmp.eq.s32.totalorder %s23, 0
      %p91 = por %p89, %p90
      %p92 = scmp.ne.s32.totalorder %s80, %s81
      %p93 = scmp.eq.s32.totalorder %s24, 1
      %p94 = por %p92, %p93
      %p96 = scmp.ne.s32.totalorder %s81, %s95
      %p97 = scmp.eq.s32.totalorder %s24, 0
      %p98 = por %p96, %p97
      %s99 = ssub.s32 %s18, %s25
      %p100 = scmp.eq.s32.totalorder %s99, 0
      %s102 = sadd.s32 %s101, 1
      %s103 = scalar_select %p100, %s101, %s102
      %p106 = pneg %p100
      %p107 = scmp.eq.s32.totalorder %s18, 1
      %p108 = por %p106, %p107
      %p109 = scmp.ne.s32.totalorder %s101, %s104
      %p110 = scmp.eq.s32.totalorder %s18, 0
      %p111 = por %p109, %p110
      %p112 = scmp.ne.s32.totalorder %s101, %s104
      %p113 = scmp.eq.s32.totalorder %s23, 1
      %p114 = por %p112, %p113
      %p115 = scmp.ne.s32.totalorder %s104, %s105
      %p116 = scmp.eq.s32.totalorder %s23, 0
      %p117 = por %p115, %p116
      %p118 = scmp.ne.s32.totalorder %s104, %s105
      %p119 = scmp.eq.s32.totalorder %s24, 1
      %p120 = por %p118, %p119
      %p122 = scmp.ne.s32.totalorder %s105, %s121
      %p123 = scmp.eq.s32.totalorder %s24, 0
      %p124 = por %p122, %p123
      %p125 = scmp.le.s32.totalorder 1, %s18
      %p126 = scmp.lt.s32.totalorder %s18, 3
      %p127 = pnand %p125, %p126
      %p128 = pneg %p127
      // Predicated region
      $region9: #{tpu_custom_call.1} parent=5 // pred_check
        _
      $region10: #{tpu_custom_call.1} parent=5 // pred_check_branch
        %130 = sbr.rel (%p127) target = $region12
      $region11: #{tpu_custom_call.1} parent=5 // pred_region
        %s131 = ssub.s32 %s18, 1
        // Predicated region
        $region13: #{tpu_custom_call.1} parent=11 // pred_check
          %p132 = pneg %p91
        $region14: #{tpu_custom_call.1} parent=11 // pred_check_branch
          %134 = sbr.rel (%p132) target = $region16
        $region15: #{tpu_custom_call.1} parent=11 // pred_region
          %136 = vsyncadd [#allocation6], 0
          %s138 = sshll.u32 %s2, 4
          %s139 = int_to_ptr.hbm [resolvable:$true] %s138
          %s140 = sshll.u32 [#allocation7], 4
          %s141 = int_to_ptr.vmem [resolvable:$true] %s140
          %143 = dma.hbm_to_vmem [thread:$0]  %s139, 64, %s141, [#allocation6]
        $region16: #{tpu_custom_call.1} parent=11 // pred_fallthru
          _
      $region12: #{tpu_custom_call.1} parent=5 // pred_fallthru
        _
      %p144 = scmp.lt.s32.totalorder %s18, 2
      // Predicated region
      $region17: #{tpu_custom_call.1} parent=5 // pred_check
        %p145 = pneg %p144
      $region18: #{tpu_custom_call.1} parent=5 // pred_check_branch
        %147 = sbr.rel (%p145) target = $region20
      $region19: #{tpu_custom_call.1} parent=5 // pred_region
        // Predicated region
        $region21: #{tpu_custom_call.1} parent=19 // pred_check
          %p148 = pneg %p38
        $region22: #{tpu_custom_call.1} parent=19 // pred_check_branch
          %150 = sbr.rel (%p148) target = $region24
        $region23: #{tpu_custom_call.1} parent=19 // pred_region
          %s151 = sand.u32 %s28, 1
          %s152 = scalar_lea.sflag [#allocation3], %s151
          %s153 = sand.u32 %s28, 1
          %s154 = smul.addr %s153, 3
          %s155 = scalar_lea.vmem [#allocation2], %s154
          %157 = vsyncadd %s152, 0
          %s158 = smul.addr %s18, 3
          %s159 = scalar_lea.hbm %s0, %s158
          %s161 = sshll.u32 %s159, 4
          %s162 = int_to_ptr.hbm [resolvable:$true] %s161
          %s163 = sshll.u32 %s155, 4
          %s164 = int_to_ptr.vmem [resolvable:$true] %s163
          %166 = dma.hbm_to_vmem [thread:$0]  %s162, 48, %s164, %s152
        $region24: #{tpu_custom_call.1} parent=19 // pred_fallthru
          _
        // Predicated region
        $region25: #{tpu_custom_call.1} parent=19 // pred_check
          %p167 = pneg %p64
        $region26: #{tpu_custom_call.1} parent=19 // pred_check_branch
          %169 = sbr.rel (%p167) target = $region28
        $region27: #{tpu_custom_call.1} parent=19 // pred_region
          %s170 = sand.u32 %s18, 1
          %s171 = scalar_lea.sflag [#allocation6], %s170
          %s172 = sand.u32 %s54, 1
          %s173 = smul.addr %s172, 296
          %s174 = scalar_lea.vmem [#allocation5], %s173
          %s175 = smul.u32 37, %s18
          %s176 = ssub.s32 38, %s175
          %p177 = scmp.lt.s32.totalorder %s176, 37
          %s178 = scalar_select %p177, %s176, 37
          %s179 = smul.u32 8, %s178
          %s180 = ssub.s32 296, %s179
          %s181 = sshll.u32 %s180, 4
          %182 = vsyncadd %s171, %s181
          %p183 = scmp.ne.s32.totalorder 0, %s179
          %s184 = smul.addr %s175, 8
          %s185 = scalar_lea.hbm %s1, %s184
          %s186 = smul.u32 8, %s178
          %s187 = sshll.u32 %s185, 4
          %s188 = int_to_ptr.hbm [resolvable:$true] %s187
          %s189 = sshll.u32 %s174, 4
          %s190 = int_to_ptr.vmem [resolvable:$true] %s189
          %s191 = sshll.u32 %s186, 4
          %195 = dma.hbm_to_vmem [thread:$0]  (%p183), %s188, %s191, %s190, %s171, 128, 128, 8
        $region28: #{tpu_custom_call.1} parent=19 // pred_fallthru
          _
      $region20: #{tpu_custom_call.1} parent=5 // pred_fallthru
        _
      %p196 = scmp.le.s32.totalorder 1, %s18
      %p197 = scmp.lt.s32.totalorder %s18, 3
      %p198 = pnand %p196, %p197
      %p199 = pneg %p198
      // Predicated region
      $region29: #{tpu_custom_call.1} parent=5 // pred_check
        _
      $region30: #{tpu_custom_call.1} parent=5 // pred_check_branch
        %201 = sbr.rel (%p198) target = $region32
      $region31: #{tpu_custom_call.1} parent=5 // pred_region
        %s202 = ssub.s32 %s18, 1
        %s203 = sand.u32 %s31, 1
        %s204 = scalar_lea.sflag [#allocation3], %s203
        %s205 = sand.u32 %s31, 1
        %s206 = smul.addr %s205, 3
        %s207 = scalar_lea.vmem [#allocation2], %s206
        // Predicated region
        $region33: #{tpu_custom_call.1} parent=31 // pred_check
          %p208 = pneg %p44
        $region34: #{tpu_custom_call.1} parent=31 // pred_check_branch
          %210 = sbr.rel (%p208) target = $region36
        $region35: #{tpu_custom_call.1} parent=31 // pred_region
          %212 = dma.done %s204, 48
        $region36: #{tpu_custom_call.1} parent=31 // pred_fallthru
          _
        %s213 = sand.u32 %s23, 1
        %s214 = scalar_lea.sflag [#allocation6], %s213
        %s215 = sand.u32 %s57, 1
        %s216 = smul.addr %s215, 296
        %s217 = scalar_lea.vmem [#allocation5], %s216
        // Predicated region
        $region37: #{tpu_custom_call.1} parent=31 // pred_check
          %p218 = pneg %p70
        $region38: #{tpu_custom_call.1} parent=31 // pred_check_branch
          %220 = sbr.rel (%p218) target = $region40
        $region39: #{tpu_custom_call.1} parent=31 // pred_region
          %222 = dma.done %s214, 4736
        $region40: #{tpu_custom_call.1} parent=31 // pred_fallthru
          _
        // Predicated region
        $region41: #{tpu_custom_call.1} parent=31 // pred_check
          %p223 = pneg %p91
        $region42: #{tpu_custom_call.1} parent=31 // pred_check_branch
          %225 = sbr.rel (%p223) target = $region44
        $region43: #{tpu_custom_call.1} parent=31 // pred_region
          %227 = dma.done [#allocation6], 64
        $region44: #{tpu_custom_call.1} parent=31 // pred_fallthru
          _
        %s228 = sand.u32 %s31, 1
        %s229 = scalar_lea.sflag [#allocation3], %s228
        %s230 = sand.u32 %s31, 1
        %s231 = smul.addr %s230, 3
        %s232 = scalar_lea.vmem [#allocation2], %s231
        %p233 = pneg %p44
        %p234 = pneg %p41
        %s235 = sand.u32 %s23, 1
        %s236 = scalar_lea.sflag [#allocation6], %s235
        %s237 = sand.u32 %s57, 1
        %s238 = smul.addr %s237, 296
        %s239 = scalar_lea.vmem [#allocation5], %s238
        %p240 = pneg %p70
        %p241 = pneg %p67
        %p242 = pneg %p91
        %p243 = pneg %p88
        %p244 = pneg %p117
        %p245 = pneg %p114
        %s246 = sand.u32 %s104, 1
        %s247 = scalar_lea.sflag [#allocation4], %s246
        %s248 = sand.u32 %s104, 1
        %s249 = smul.addr %s248, 296
        %s250 = scalar_lea.vmem [#allocation8], %s249
        %s251 = smul.u32 37, %s23
        %s252 = ssub.s32 38, %s251
        %p253 = scmp.lt.s32.totalorder %s252, 37
        %s254 = scalar_select %p253, %s252, 37
        %s255 = smul.u32 8, %s254
        %s256 = smul.u32 37, %s23
        %s257 = ssub.s32 38, %s256
        %p258 = scmp.lt.s32.totalorder %s257, 37
        %s259 = scalar_select %p258, %s257, 37
        %s260 = smul.u32 8, %s259
        %v261 = vld [vmem:[%s217] sm:$0xff]
        %v262 = vld [vmem:[%s217 + $0x8] sm:$0xff]
        %v263 = vld [vmem:[%s217 + $0x10] sm:$0xff]
        %v264 = vld [vmem:[%s217 + $0x18] sm:$0xff]
        %v265 = vld [vmem:[%s217 + $0x20] sm:$0xff]
        %v266 = vld [vmem:[%s217 + $0x28] sm:$0xff]
        %v267 = vld [vmem:[%s217 + $0x30] sm:$0xff]
        %v268 = vld [vmem:[%s217 + $0x38] sm:$0xff]
        %v269 = vld [vmem:[%s217 + $0x40] sm:$0xff]
        %v270 = vld [vmem:[%s217 + $0x48] sm:$0xff]
        %v271 = vld [vmem:[%s217 + $0x50] sm:$0xff]
        %v272 = vld [vmem:[%s217 + $0x58] sm:$0xff]
        %v273 = vld [vmem:[%s217 + $0x60] sm:$0xff]
        %v274 = vld [vmem:[%s217 + $0x68] sm:$0xff]
        %v275 = vld [vmem:[%s217 + $0x70] sm:$0xff]
        %v276 = vld [vmem:[%s217 + $0x78] sm:$0xff]
        %v277 = vld [vmem:[%s217 + $0x80] sm:$0xff]
        %v278 = vld [vmem:[%s217 + $0x88] sm:$0xff]
        %v279 = vld [vmem:[%s217 + $0x90] sm:$0xff]
        %v280 = vld [vmem:[%s217 + $0x98] sm:$0xff]
        %v281 = vld [vmem:[%s217 + $0xa0] sm:$0xff]
        %v282 = vld [vmem:[%s217 + $0xa8] sm:$0xff]
        %v283 = vld [vmem:[%s217 + $0xb0] sm:$0xff]
        %v284 = vld [vmem:[%s217 + $0xb8] sm:$0xff]
        %v285 = vld [vmem:[%s217 + $0xc0] sm:$0xff]
        %v286 = vld [vmem:[%s217 + $0xc8] sm:$0xff]
        %v287 = vld [vmem:[%s217 + $0xd0] sm:$0xff]
        %v288 = vld [vmem:[%s217 + $0xd8] sm:$0xff]
        %v289 = vld [vmem:[%s217 + $0xe0] sm:$0xff]
        %v290 = vld [vmem:[%s217 + $0xe8] sm:$0xff]
        %v291 = vld [vmem:[%s217 + $0xf0] sm:$0xff]
        %v292 = vld [vmem:[%s217 + $0xf8] sm:$0xff]
        %v293 = vld [vmem:[%s217 + $0x100] sm:$0xff]
        %v294 = vld [vmem:[%s217 + $0x108] sm:$0xff]
        %v295 = vld [vmem:[%s217 + $0x110] sm:$0xff]
        %v296 = vld [vmem:[%s217 + $0x118] sm:$0xff]
        %v297 = vld [vmem:[%s217 + $0x120] sm:$0xff]
        %v298 = vld [vmem:[#allocation7] sm:$0xf]
        %v299 = vld [vmem:[%s207] sm:$0x7]
        %v300 = vperm.slane %v299, 0
        %v301 = vperm.slane %v299, 1
        %v302 = vperm.slane %v299, 2
        %303 = vxpose.xlu0.b32.start [1/16] %v300, 128
        %304 = vxpose.xlu0.b32.cont [2/16] 0, 128
        %305 = vxpose.xlu0.b32.cont [3/16] 0, 128
        %306 = vxpose.xlu0.b32.cont [4/16] 0, 128
        %307 = vxpose.xlu0.b32.cont [5/16] 0, 128
        %308 = vxpose.xlu0.b32.cont [6/16] 0, 128
        %309 = vxpose.xlu0.b32.cont [7/16] 0, 128
        %310 = vxpose.xlu0.b32.cont [8/16] 0, 128
        %311 = vxpose.xlu0.b32.cont [9/16] 0, 128
        %312 = vxpose.xlu0.b32.cont [10/16] 0, 128
        %313 = vxpose.xlu0.b32.cont [11/16] 0, 128
        %314 = vxpose.xlu0.b32.cont [12/16] 0, 128
        %315 = vxpose.xlu0.b32.cont [13/16] 0, 128
        %316 = vxpose.xlu0.b32.cont [14/16] 0, 128
        %317 = vxpose.xlu0.b32.cont [15/16] 0, 128
        %318 = vxpose.xlu0.b32.end [16/16] 0, 128
        %v319 = vpop.trf.xlu0
        %v320 = vpop.trf.xlu0
        %v321 = vpop.trf.xlu0
        %v322 = vpop.trf.xlu0
        %v323 = vpop.trf.xlu0
        %v324 = vpop.trf.xlu0
        %v325 = vpop.trf.xlu0
        %v326 = vpop.trf.xlu0
        %v327 = vpop.trf.xlu0
        %v328 = vpop.trf.xlu0
        %v329 = vpop.trf.xlu0
        %v330 = vpop.trf.xlu0
        %v331 = vpop.trf.xlu0
        %v332 = vpop.trf.xlu0
        %v333 = vpop.trf.xlu0
        %v334 = vpop.trf.xlu0
        %335 = vxpose.xlu0.b32.start [1/16] %v301, 128
        %336 = vxpose.xlu0.b32.cont [2/16] 0, 128
        %337 = vxpose.xlu0.b32.cont [3/16] 0, 128
        %338 = vxpose.xlu0.b32.cont [4/16] 0, 128
        %339 = vxpose.xlu0.b32.cont [5/16] 0, 128
        %340 = vxpose.xlu0.b32.cont [6/16] 0, 128
        %341 = vxpose.xlu0.b32.cont [7/16] 0, 128
        %342 = vxpose.xlu0.b32.cont [8/16] 0, 128
        %343 = vxpose.xlu0.b32.cont [9/16] 0, 128
        %344 = vxpose.xlu0.b32.cont [10/16] 0, 128
        %345 = vxpose.xlu0.b32.cont [11/16] 0, 128
        %346 = vxpose.xlu0.b32.cont [12/16] 0, 128
        %347 = vxpose.xlu0.b32.cont [13/16] 0, 128
        %348 = vxpose.xlu0.b32.cont [14/16] 0, 128
        %349 = vxpose.xlu0.b32.cont [15/16] 0, 128
        %350 = vxpose.xlu0.b32.end [16/16] 0, 128
        %v351 = vpop.trf.xlu0
        %v352 = vpop.trf.xlu0
        %v353 = vpop.trf.xlu0
        %v354 = vpop.trf.xlu0
        %v355 = vpop.trf.xlu0
        %v356 = vpop.trf.xlu0
        %v357 = vpop.trf.xlu0
        %v358 = vpop.trf.xlu0
        %v359 = vpop.trf.xlu0
        %v360 = vpop.trf.xlu0
        %v361 = vpop.trf.xlu0
        %v362 = vpop.trf.xlu0
        %v363 = vpop.trf.xlu0
        %v364 = vpop.trf.xlu0
        %v365 = vpop.trf.xlu0
        %v366 = vpop.trf.xlu0
        %367 = vxpose.xlu0.b32.start [1/16] %v302, 128
        %368 = vxpose.xlu0.b32.cont [2/16] 0, 128
        %369 = vxpose.xlu0.b32.cont [3/16] 0, 128
        %370 = vxpose.xlu0.b32.cont [4/16] 0, 128
        %371 = vxpose.xlu0.b32.cont [5/16] 0, 128
        %372 = vxpose.xlu0.b32.cont [6/16] 0, 128
        %373 = vxpose.xlu0.b32.cont [7/16] 0, 128
        %374 = vxpose.xlu0.b32.cont [8/16] 0, 128
        %375 = vxpose.xlu0.b32.cont [9/16] 0, 128
        %376 = vxpose.xlu0.b32.cont [10/16] 0, 128
        %377 = vxpose.xlu0.b32.cont [11/16] 0, 128
        %378 = vxpose.xlu0.b32.cont [12/16] 0, 128
        %379 = vxpose.xlu0.b32.cont [13/16] 0, 128
        %380 = vxpose.xlu0.b32.cont [14/16] 0, 128
        %381 = vxpose.xlu0.b32.cont [15/16] 0, 128
        %382 = vxpose.xlu0.b32.end [16/16] 0, 128
        %v383 = vpop.trf.xlu0
        %v384 = vpop.trf.xlu0
        %v385 = vpop.trf.xlu0
        %v386 = vpop.trf.xlu0
        %v387 = vpop.trf.xlu0
        %v388 = vpop.trf.xlu0
        %v389 = vpop.trf.xlu0
        %v390 = vpop.trf.xlu0
        %v391 = vpop.trf.xlu0
        %v392 = vpop.trf.xlu0
        %v393 = vpop.trf.xlu0
        %v394 = vpop.trf.xlu0
        %v395 = vpop.trf.xlu0
        %v396 = vpop.trf.xlu0
        %v397 = vpop.trf.xlu0
        %v398 = vpop.trf.xlu0
        %399 = vset.pattern.permute.xlu0 0
        %400 = vperm.xlu0 %399, %v319
        %v401 = vpop.permute.xlu0 %400
        %402 = vset.pattern.permute.xlu0 0
        %403 = vperm.xlu0 %402, %v320
        %v404 = vpop.permute.xlu0 %403
        %405 = vset.pattern.permute.xlu0 0
        %406 = vperm.xlu0 %405, %v321
        %v407 = vpop.permute.xlu0 %406
        %408 = vset.pattern.permute.xlu0 0
        %409 = vperm.xlu0 %408, %v322
        %v410 = vpop.permute.xlu0 %409
        %411 = vset.pattern.permute.xlu0 0
        %412 = vperm.xlu0 %411, %v323
        %v413 = vpop.permute.xlu0 %412
        %414 = vset.pattern.permute.xlu0 0
        %415 = vperm.xlu0 %414, %v324
        %v416 = vpop.permute.xlu0 %415
        %417 = vset.pattern.permute.xlu0 0
        %418 = vperm.xlu0 %417, %v325
        %v419 = vpop.permute.xlu0 %418
        %420 = vset.pattern.permute.xlu0 0
        %421 = vperm.xlu0 %420, %v326
        %v422 = vpop.permute.xlu0 %421
        %423 = vset.pattern.permute.xlu0 0
        %424 = vperm.xlu0 %423, %v327
        %v425 = vpop.permute.xlu0 %424
        %426 = vset.pattern.permute.xlu0 0
        %427 = vperm.xlu0 %426, %v328
        %v428 = vpop.permute.xlu0 %427
        %429 = vset.pattern.permute.xlu0 0
        %430 = vperm.xlu0 %429, %v329
        %v431 = vpop.permute.xlu0 %430
        %432 = vset.pattern.permute.xlu0 0
        %433 = vperm.xlu0 %432, %v330
        %v434 = vpop.permute.xlu0 %433
        %435 = vset.pattern.permute.xlu0 0
        %436 = vperm.xlu0 %435, %v331
        %v437 = vpop.permute.xlu0 %436
        %438 = vset.pattern.permute.xlu0 0
        %439 = vperm.xlu0 %438, %v332
        %v440 = vpop.permute.xlu0 %439
        %441 = vset.pattern.permute.xlu0 0
        %442 = vperm.xlu0 %441, %v333
        %v443 = vpop.permute.xlu0 %442
        %444 = vset.pattern.permute.xlu0 0
        %445 = vperm.xlu0 %444, %v334
        %v446 = vpop.permute.xlu0 %445
        %447 = vset.pattern.permute.xlu0 0
        %448 = vperm.xlu0 %447, %v351
        %v449 = vpop.permute.xlu0 %448
        %450 = vset.pattern.permute.xlu0 0
        %451 = vperm.xlu0 %450, %v352
        %v452 = vpop.permute.xlu0 %451
        %453 = vset.pattern.permute.xlu0 0
        %454 = vperm.xlu0 %453, %v353
        %v455 = vpop.permute.xlu0 %454
        %456 = vset.pattern.permute.xlu0 0
        %457 = vperm.xlu0 %456, %v354
        %v458 = vpop.permute.xlu0 %457
        %459 = vset.pattern.permute.xlu0 0
        %460 = vperm.xlu0 %459, %v355
        %v461 = vpop.permute.xlu0 %460
        %462 = vset.pattern.permute.xlu0 0
        %463 = vperm.xlu0 %462, %v356
        %v464 = vpop.permute.xlu0 %463
        %465 = vset.pattern.permute.xlu0 0
        %466 = vperm.xlu0 %465, %v357
        %v467 = vpop.permute.xlu0 %466
        %468 = vset.pattern.permute.xlu0 0
        %469 = vperm.xlu0 %468, %v358
        %v470 = vpop.permute.xlu0 %469
        %471 = vset.pattern.permute.xlu0 0
        %472 = vperm.xlu0 %471, %v359
        %v473 = vpop.permute.xlu0 %472
        %474 = vset.pattern.permute.xlu0 0
        %475 = vperm.xlu0 %474, %v360
        %v476 = vpop.permute.xlu0 %475
        %477 = vset.pattern.permute.xlu0 0
        %478 = vperm.xlu0 %477, %v361
        %v479 = vpop.permute.xlu0 %478
        %480 = vset.pattern.permute.xlu0 0
        %481 = vperm.xlu0 %480, %v362
        %v482 = vpop.permute.xlu0 %481
        %483 = vset.pattern.permute.xlu0 0
        %484 = vperm.xlu0 %483, %v363
        %v485 = vpop.permute.xlu0 %484
        %486 = vset.pattern.permute.xlu0 0
        %487 = vperm.xlu0 %486, %v364
        %v488 = vpop.permute.xlu0 %487
        %489 = vset.pattern.permute.xlu0 0
        %490 = vperm.xlu0 %489, %v365
        %v491 = vpop.permute.xlu0 %490
        %492 = vset.pattern.permute.xlu0 0
        %493 = vperm.xlu0 %492, %v366
        %v494 = vpop.permute.xlu0 %493
        %495 = vset.pattern.permute.xlu0 0
        %496 = vperm.xlu0 %495, %v383
        %v497 = vpop.permute.xlu0 %496
        %498 = vset.pattern.permute.xlu0 0
        %499 = vperm.xlu0 %498, %v384
        %v500 = vpop.permute.xlu0 %499
        %501 = vset.pattern.permute.xlu0 0
        %502 = vperm.xlu0 %501, %v385
        %v503 = vpop.permute.xlu0 %502
        %504 = vset.pattern.permute.xlu0 0
        %505 = vperm.xlu0 %504, %v386
        %v506 = vpop.permute.xlu0 %505
        %507 = vset.pattern.permute.xlu0 0
        %508 = vperm.xlu0 %507, %v387
        %v509 = vpop.permute.xlu0 %508
        %vm510 = vcmp.eq.s32.totalorder %v401, 0
        %vm511 = vcmp.eq.s32.totalorder %v404, 0
        %vm512 = vcmp.eq.s32.totalorder %v407, 0
        %vm513 = vcmp.eq.s32.totalorder %v410, 0
        %vm514 = vcmp.eq.s32.totalorder %v413, 0
        %vm515 = vcmp.eq.s32.totalorder %v416, 0
        %vm516 = vcmp.eq.s32.totalorder %v419, 0
        %vm517 = vcmp.eq.s32.totalorder %v422, 0
        %vm518 = vcmp.eq.s32.totalorder %v425, 0
        %vm519 = vcmp.eq.s32.totalorder %v428, 0
        %vm520 = vcmp.eq.s32.totalorder %v431, 0
        %vm521 = vcmp.eq.s32.totalorder %v434, 0
        %vm522 = vcmp.eq.s32.totalorder %v437, 0
        %vm523 = vcmp.eq.s32.totalorder %v440, 0
        %vm524 = vcmp.eq.s32.totalorder %v443, 0
        %vm525 = vcmp.eq.s32.totalorder %v446, 0
        %vm526 = vcmp.eq.s32.totalorder %v449, 0
        %vm527 = vcmp.eq.s32.totalorder %v452, 0
        %vm528 = vcmp.eq.s32.totalorder %v455, 0
        %vm529 = vcmp.eq.s32.totalorder %v458, 0
        %vm530 = vcmp.eq.s32.totalorder %v461, 0
        %vm531 = vcmp.eq.s32.totalorder %v464, 0
        %vm532 = vcmp.eq.s32.totalorder %v467, 0
        %vm533 = vcmp.eq.s32.totalorder %v470, 0
        %vm534 = vcmp.eq.s32.totalorder %v473, 0
        %vm535 = vcmp.eq.s32.totalorder %v476, 0
        %vm536 = vcmp.eq.s32.totalorder %v479, 0
        %vm537 = vcmp.eq.s32.totalorder %v482, 0
        %vm538 = vcmp.eq.s32.totalorder %v485, 0
        %vm539 = vcmp.eq.s32.totalorder %v488, 0
        %vm540 = vcmp.eq.s32.totalorder %v491, 0
        %vm541 = vcmp.eq.s32.totalorder %v494, 0
        %vm542 = vcmp.eq.s32.totalorder %v497, 0
        %vm543 = vcmp.eq.s32.totalorder %v500, 0
        %vm544 = vcmp.eq.s32.totalorder %v503, 0
        %vm545 = vcmp.eq.s32.totalorder %v506, 0
        %vm546 = vcmp.eq.s32.totalorder %v509, 0
        %v547 = vperm.slane %v298, 0
        %v548 = vsel %vm510, %v547, 0.0
        %v549 = vsel %vm511, %v547, 0.0
        %v550 = vsel %vm512, %v547, 0.0
        %v551 = vsel %vm513, %v547, 0.0
        %v552 = vsel %vm514, %v547, 0.0
        %v553 = vsel %vm515, %v547, 0.0
        %v554 = vsel %vm516, %v547, 0.0
        %v555 = vsel %vm517, %v547, 0.0
        %v556 = vsel %vm518, %v547, 0.0
        %v557 = vsel %vm519, %v547, 0.0
        %v558 = vsel %vm520, %v547, 0.0
        %v559 = vsel %vm521, %v547, 0.0
        %v560 = vsel %vm522, %v547, 0.0
        %v561 = vsel %vm523, %v547, 0.0
        %v562 = vsel %vm524, %v547, 0.0
        %v563 = vsel %vm525, %v547, 0.0
        %v564 = vsel %vm526, %v547, 0.0
        %v565 = vsel %vm527, %v547, 0.0
        %v566 = vsel %vm528, %v547, 0.0
        %v567 = vsel %vm529, %v547, 0.0
        %v568 = vsel %vm530, %v547, 0.0
        %v569 = vsel %vm531, %v547, 0.0
        %v570 = vsel %vm532, %v547, 0.0
        %v571 = vsel %vm533, %v547, 0.0
        %v572 = vsel %vm534, %v547, 0.0
        %v573 = vsel %vm535, %v547, 0.0
        %v574 = vsel %vm536, %v547, 0.0
        %v575 = vsel %vm537, %v547, 0.0
        %v576 = vsel %vm538, %v547, 0.0
        %v577 = vsel %vm539, %v547, 0.0
        %v578 = vsel %vm540, %v547, 0.0
        %v579 = vsel %vm541, %v547, 0.0
        %v580 = vsel %vm542, %v547, 0.0
        %v581 = vsel %vm543, %v547, 0.0
        %v582 = vsel %vm544, %v547, 0.0
        %v583 = vsel %vm545, %v547, 0.0
        %v584 = vsel %vm546, %v547, 0.0
        %vm585 = vcmp.eq.s32.totalorder %v401, 1
        %vm586 = vcmp.eq.s32.totalorder %v404, 1
        %vm587 = vcmp.eq.s32.totalorder %v407, 1
        %vm588 = vcmp.eq.s32.totalorder %v410, 1
        %vm589 = vcmp.eq.s32.totalorder %v413, 1
        %vm590 = vcmp.eq.s32.totalorder %v416, 1
        %vm591 = vcmp.eq.s32.totalorder %v419, 1
        %vm592 = vcmp.eq.s32.totalorder %v422, 1
        %vm593 = vcmp.eq.s32.totalorder %v425, 1
        %vm594 = vcmp.eq.s32.totalorder %v428, 1
        %vm595 = vcmp.eq.s32.totalorder %v431, 1
        %vm596 = vcmp.eq.s32.totalorder %v434, 1
        %vm597 = vcmp.eq.s32.totalorder %v437, 1
        %vm598 = vcmp.eq.s32.totalorder %v440, 1
        %vm599 = vcmp.eq.s32.totalorder %v443, 1
        %vm600 = vcmp.eq.s32.totalorder %v446, 1
        %vm601 = vcmp.eq.s32.totalorder %v449, 1
        %vm602 = vcmp.eq.s32.totalorder %v452, 1
        %vm603 = vcmp.eq.s32.totalorder %v455, 1
        %vm604 = vcmp.eq.s32.totalorder %v458, 1
        %vm605 = vcmp.eq.s32.totalorder %v461, 1
        %vm606 = vcmp.eq.s32.totalorder %v464, 1
        %vm607 = vcmp.eq.s32.totalorder %v467, 1
        %vm608 = vcmp.eq.s32.totalorder %v470, 1
        %vm609 = vcmp.eq.s32.totalorder %v473, 1
        %vm610 = vcmp.eq.s32.totalorder %v476, 1
        %vm611 = vcmp.eq.s32.totalorder %v479, 1
        %vm612 = vcmp.eq.s32.totalorder %v482, 1
        %vm613 = vcmp.eq.s32.totalorder %v485, 1
        %vm614 = vcmp.eq.s32.totalorder %v488, 1
        %vm615 = vcmp.eq.s32.totalorder %v491, 1
        %vm616 = vcmp.eq.s32.totalorder %v494, 1
        %vm617 = vcmp.eq.s32.totalorder %v497, 1
        %vm618 = vcmp.eq.s32.totalorder %v500, 1
        %vm619 = vcmp.eq.s32.totalorder %v503, 1
        %vm620 = vcmp.eq.s32.totalorder %v506, 1
        %vm621 = vcmp.eq.s32.totalorder %v509, 1
        %v622 = vperm.slane %v298, 1
        %v623 = vsel %vm585, %v622, %v548
        %v624 = vsel %vm586, %v622, %v549
        %v625 = vsel %vm587, %v622, %v550
        %v626 = vsel %vm588, %v622, %v551
        %v627 = vsel %vm589, %v622, %v552
        %v628 = vsel %vm590, %v622, %v553
        %v629 = vsel %vm591, %v622, %v554
        %v630 = vsel %vm592, %v622, %v555
        %v631 = vsel %vm593, %v622, %v556
        %v632 = vsel %vm594, %v622, %v557
        %v633 = vsel %vm595, %v622, %v558
        %v634 = vsel %vm596, %v622, %v559
        %v635 = vsel %vm597, %v622, %v560
        %v636 = vsel %vm598, %v622, %v561
        %v637 = vsel %vm599, %v622, %v562
        %v638 = vsel %vm600, %v622, %v563
        %v639 = vsel %vm601, %v622, %v564
        %v640 = vsel %vm602, %v622, %v565
        %v641 = vsel %vm603, %v622, %v566
        %v642 = vsel %vm604, %v622, %v567
        %v643 = vsel %vm605, %v622, %v568
        %v644 = vsel %vm606, %v622, %v569
        %v645 = vsel %vm607, %v622, %v570
        %v646 = vsel %vm608, %v622, %v571
        %v647 = vsel %vm609, %v622, %v572
        %v648 = vsel %vm610, %v622, %v573
        %v649 = vsel %vm611, %v622, %v574
        %v650 = vsel %vm612, %v622, %v575
        %v651 = vsel %vm613, %v622, %v576
        %v652 = vsel %vm614, %v622, %v577
        %v653 = vsel %vm615, %v622, %v578
        %v654 = vsel %vm616, %v622, %v579
        %v655 = vsel %vm617, %v622, %v580
        %v656 = vsel %vm618, %v622, %v581
        %v657 = vsel %vm619, %v622, %v582
        %v658 = vsel %vm620, %v622, %v583
        %v659 = vsel %vm621, %v622, %v584
        %vm660 = vcmp.eq.s32.totalorder %v401, 2
        %vm661 = vcmp.eq.s32.totalorder %v404, 2
        %vm662 = vcmp.eq.s32.totalorder %v407, 2
        %vm663 = vcmp.eq.s32.totalorder %v410, 2
        %vm664 = vcmp.eq.s32.totalorder %v413, 2
        %vm665 = vcmp.eq.s32.totalorder %v416, 2
        %vm666 = vcmp.eq.s32.totalorder %v419, 2
        %vm667 = vcmp.eq.s32.totalorder %v422, 2
        %vm668 = vcmp.eq.s32.totalorder %v425, 2
        %vm669 = vcmp.eq.s32.totalorder %v428, 2
        %vm670 = vcmp.eq.s32.totalorder %v431, 2
        %vm671 = vcmp.eq.s32.totalorder %v434, 2
        %vm672 = vcmp.eq.s32.totalorder %v437, 2
        %vm673 = vcmp.eq.s32.totalorder %v440, 2
        %vm674 = vcmp.eq.s32.totalorder %v443, 2
        %vm675 = vcmp.eq.s32.totalorder %v446, 2
        %vm676 = vcmp.eq.s32.totalorder %v449, 2
        %vm677 = vcmp.eq.s32.totalorder %v452, 2
        %vm678 = vcmp.eq.s32.totalorder %v455, 2
        %vm679 = vcmp.eq.s32.totalorder %v458, 2
        %vm680 = vcmp.eq.s32.totalorder %v461, 2
        %vm681 = vcmp.eq.s32.totalorder %v464, 2
        %vm682 = vcmp.eq.s32.totalorder %v467, 2
        %vm683 = vcmp.eq.s32.totalorder %v470, 2
        %vm684 = vcmp.eq.s32.totalorder %v473, 2
        %vm685 = vcmp.eq.s32.totalorder %v476, 2
        %vm686 = vcmp.eq.s32.totalorder %v479, 2
        %vm687 = vcmp.eq.s32.totalorder %v482, 2
        %vm688 = vcmp.eq.s32.totalorder %v485, 2
        %vm689 = vcmp.eq.s32.totalorder %v488, 2
        %vm690 = vcmp.eq.s32.totalorder %v491, 2
        %vm691 = vcmp.eq.s32.totalorder %v494, 2
        %vm692 = vcmp.eq.s32.totalorder %v497, 2
        %vm693 = vcmp.eq.s32.totalorder %v500, 2
        %vm694 = vcmp.eq.s32.totalorder %v503, 2
        %vm695 = vcmp.eq.s32.totalorder %v506, 2
        %vm696 = vcmp.eq.s32.totalorder %v509, 2
        %v697 = vperm.slane %v298, 2
        %v698 = vsel %vm660, %v697, %v623
        %v699 = vsel %vm661, %v697, %v624
        %v700 = vsel %vm662, %v697, %v625
        %v701 = vsel %vm663, %v697, %v626
        %v702 = vsel %vm664, %v697, %v627
        %v703 = vsel %vm665, %v697, %v628
        %v704 = vsel %vm666, %v697, %v629
        %v705 = vsel %vm667, %v697, %v630
        %v706 = vsel %vm668, %v697, %v631
        %v707 = vsel %vm669, %v697, %v632
        %v708 = vsel %vm670, %v697, %v633
        %v709 = vsel %vm671, %v697, %v634
        %v710 = vsel %vm672, %v697, %v635
        %v711 = vsel %vm673, %v697, %v636
        %v712 = vsel %vm674, %v697, %v637
        %v713 = vsel %vm675, %v697, %v638
        %v714 = vsel %vm676, %v697, %v639
        %v715 = vsel %vm677, %v697, %v640
        %v716 = vsel %vm678, %v697, %v641
        %v717 = vsel %vm679, %v697, %v642
        %v718 = vsel %vm680, %v697, %v643
        %v719 = vsel %vm681, %v697, %v644
        %v720 = vsel %vm682, %v697, %v645
        %v721 = vsel %vm683, %v697, %v646
        %v722 = vsel %vm684, %v697, %v647
        %v723 = vsel %vm685, %v697, %v648
        %v724 = vsel %vm686, %v697, %v649
        %v725 = vsel %vm687, %v697, %v650
        %v726 = vsel %vm688, %v697, %v651
        %v727 = vsel %vm689, %v697, %v652
        %v728 = vsel %vm690, %v697, %v653
        %v729 = vsel %vm691, %v697, %v654
        %v730 = vsel %vm692, %v697, %v655
        %v731 = vsel %vm693, %v697, %v656
        %v732 = vsel %vm694, %v697, %v657
        %v733 = vsel %vm695, %v697, %v658
        %v734 = vsel %vm696, %v697, %v659
        %vm735 = vcmp.eq.s32.totalorder %v401, 3
        %vm736 = vcmp.eq.s32.totalorder %v404, 3
        %vm737 = vcmp.eq.s32.totalorder %v407, 3
        %vm738 = vcmp.eq.s32.totalorder %v410, 3
        %vm739 = vcmp.eq.s32.totalorder %v413, 3
        %vm740 = vcmp.eq.s32.totalorder %v416, 3
        %vm741 = vcmp.eq.s32.totalorder %v419, 3
        %vm742 = vcmp.eq.s32.totalorder %v422, 3
        %vm743 = vcmp.eq.s32.totalorder %v425, 3
        %vm744 = vcmp.eq.s32.totalorder %v428, 3
        %vm745 = vcmp.eq.s32.totalorder %v431, 3
        %vm746 = vcmp.eq.s32.totalorder %v434, 3
        %vm747 = vcmp.eq.s32.totalorder %v437, 3
        %vm748 = vcmp.eq.s32.totalorder %v440, 3
        %vm749 = vcmp.eq.s32.totalorder %v443, 3
        %vm750 = vcmp.eq.s32.totalorder %v446, 3
        %vm751 = vcmp.eq.s32.totalorder %v449, 3
        %vm752 = vcmp.eq.s32.totalorder %v452, 3
        %vm753 = vcmp.eq.s32.totalorder %v455, 3
        %vm754 = vcmp.eq.s32.totalorder %v458, 3
        %vm755 = vcmp.eq.s32.totalorder %v461, 3
        %vm756 = vcmp.eq.s32.totalorder %v464, 3
        %vm757 = vcmp.eq.s32.totalorder %v467, 3
        %vm758 = vcmp.eq.s32.totalorder %v470, 3
        %vm759 = vcmp.eq.s32.totalorder %v473, 3
        %vm760 = vcmp.eq.s32.totalorder %v476, 3
        %vm761 = vcmp.eq.s32.totalorder %v479, 3
        %vm762 = vcmp.eq.s32.totalorder %v482, 3
        %vm763 = vcmp.eq.s32.totalorder %v485, 3
        %vm764 = vcmp.eq.s32.totalorder %v488, 3
        %vm765 = vcmp.eq.s32.totalorder %v491, 3
        %vm766 = vcmp.eq.s32.totalorder %v494, 3
        %vm767 = vcmp.eq.s32.totalorder %v497, 3
        %vm768 = vcmp.eq.s32.totalorder %v500, 3
        %vm769 = vcmp.eq.s32.totalorder %v503, 3
        %vm770 = vcmp.eq.s32.totalorder %v506, 3
        %vm771 = vcmp.eq.s32.totalorder %v509, 3
        %v772 = vperm.slane %v298, 3
        %v773 = vsel %vm735, %v772, %v698
        %v774 = vsel %vm736, %v772, %v699
        %v775 = vsel %vm737, %v772, %v700
        %v776 = vsel %vm738, %v772, %v701
        %v777 = vsel %vm739, %v772, %v702
        %v778 = vsel %vm740, %v772, %v703
        %v779 = vsel %vm741, %v772, %v704
        %v780 = vsel %vm742, %v772, %v705
        %v781 = vsel %vm743, %v772, %v706
        %v782 = vsel %vm744, %v772, %v707
        %v783 = vsel %vm745, %v772, %v708
        %v784 = vsel %vm746, %v772, %v709
        %v785 = vsel %vm747, %v772, %v710
        %v786 = vsel %vm748, %v772, %v711
        %v787 = vsel %vm749, %v772, %v712
        %v788 = vsel %vm750, %v772, %v713
        %v789 = vsel %vm751, %v772, %v714
        %v790 = vsel %vm752, %v772, %v715
        %v791 = vsel %vm753, %v772, %v716
        %v792 = vsel %vm754, %v772, %v717
        %v793 = vsel %vm755, %v772, %v718
        %v794 = vsel %vm756, %v772, %v719
        %v795 = vsel %vm757, %v772, %v720
        %v796 = vsel %vm758, %v772, %v721
        %v797 = vsel %vm759, %v772, %v722
        %v798 = vsel %vm760, %v772, %v723
        %v799 = vsel %vm761, %v772, %v724
        %v800 = vsel %vm762, %v772, %v725
        %v801 = vsel %vm763, %v772, %v726
        %v802 = vsel %vm764, %v772, %v727
        %v803 = vsel %vm765, %v772, %v728
        %v804 = vsel %vm766, %v772, %v729
        %v805 = vsel %vm767, %v772, %v730
        %v806 = vsel %vm768, %v772, %v731
        %v807 = vsel %vm769, %v772, %v732
        %v808 = vsel %vm770, %v772, %v733
        %v809 = vsel %vm771, %v772, %v734
        %v810 = vmul.f32 %v773, %v261
        %v811 = vmul.f32 %v774, %v262
        %v812 = vmul.f32 %v775, %v263
        %v813 = vmul.f32 %v776, %v264
        %v814 = vmul.f32 %v777, %v265
        %v815 = vmul.f32 %v778, %v266
        %v816 = vmul.f32 %v779, %v267
        %v817 = vmul.f32 %v780, %v268
        %v818 = vmul.f32 %v781, %v269
        %v819 = vmul.f32 %v782, %v270
        %v820 = vmul.f32 %v783, %v271
        %v821 = vmul.f32 %v784, %v272
        %v822 = vmul.f32 %v785, %v273
        %v823 = vmul.f32 %v786, %v274
        %v824 = vmul.f32 %v787, %v275
        %v825 = vmul.f32 %v788, %v276
        %v826 = vmul.f32 %v789, %v277
        %v827 = vmul.f32 %v790, %v278
        %v828 = vmul.f32 %v791, %v279
        %v829 = vmul.f32 %v792, %v280
        %v830 = vmul.f32 %v793, %v281
        %v831 = vmul.f32 %v794, %v282
        %v832 = vmul.f32 %v795, %v283
        %v833 = vmul.f32 %v796, %v284
        %v834 = vmul.f32 %v797, %v285
        %v835 = vmul.f32 %v798, %v286
        %v836 = vmul.f32 %v799, %v287
        %v837 = vmul.f32 %v800, %v288
        %v838 = vmul.f32 %v801, %v289
        %v839 = vmul.f32 %v802, %v290
        %v840 = vmul.f32 %v803, %v291
        %v841 = vmul.f32 %v804, %v292
        %v842 = vmul.f32 %v805, %v293
        %v843 = vmul.f32 %v806, %v294
        %v844 = vmul.f32 %v807, %v295
        %v845 = vmul.f32 %v808, %v296
        %v846 = vmul.f32 %v809, %v297
        %847 = vst [vmem:[%s250] sm:$0xff] %v810
        %848 = vst [vmem:[%s250 + $0x8] sm:$0xff] %v811
        %849 = vst [vmem:[%s250 + $0x10] sm:$0xff] %v812
        %850 = vst [vmem:[%s250 + $0x18] sm:$0xff] %v813
        %851 = vst [vmem:[%s250 + $0x20] sm:$0xff] %v814
        %852 = vst [vmem:[%s250 + $0x28] sm:$0xff] %v815
        %853 = vst [vmem:[%s250 + $0x30] sm:$0xff] %v816
        %854 = vst [vmem:[%s250 + $0x38] sm:$0xff] %v817
        %855 = vst [vmem:[%s250 + $0x40] sm:$0xff] %v818
        %856 = vst [vmem:[%s250 + $0x48] sm:$0xff] %v819
        %857 = vst [vmem:[%s250 + $0x50] sm:$0xff] %v820
        %858 = vst [vmem:[%s250 + $0x58] sm:$0xff] %v821
        %859 = vst [vmem:[%s250 + $0x60] sm:$0xff] %v822
        %860 = vst [vmem:[%s250 + $0x68] sm:$0xff] %v823
        %861 = vst [vmem:[%s250 + $0x70] sm:$0xff] %v824
        %862 = vst [vmem:[%s250 + $0x78] sm:$0xff] %v825
        %863 = vst [vmem:[%s250 + $0x80] sm:$0xff] %v826
        %864 = vst [vmem:[%s250 + $0x88] sm:$0xff] %v827
        %865 = vst [vmem:[%s250 + $0x90] sm:$0xff] %v828
        %866 = vst [vmem:[%s250 + $0x98] sm:$0xff] %v829
        %867 = vst [vmem:[%s250 + $0xa0] sm:$0xff] %v830
        %868 = vst [vmem:[%s250 + $0xa8] sm:$0xff] %v831
        %869 = vst [vmem:[%s250 + $0xb0] sm:$0xff] %v832
        %870 = vst [vmem:[%s250 + $0xb8] sm:$0xff] %v833
        %871 = vst [vmem:[%s250 + $0xc0] sm:$0xff] %v834
        %872 = vst [vmem:[%s250 + $0xc8] sm:$0xff] %v835
        %873 = vst [vmem:[%s250 + $0xd0] sm:$0xff] %v836
        %874 = vst [vmem:[%s250 + $0xd8] sm:$0xff] %v837
        %875 = vst [vmem:[%s250 + $0xe0] sm:$0xff] %v838
        %876 = vst [vmem:[%s250 + $0xe8] sm:$0xff] %v839
        %877 = vst [vmem:[%s250 + $0xf0] sm:$0xff] %v840
        %878 = vst [vmem:[%s250 + $0xf8] sm:$0xff] %v841
        %879 = vst [vmem:[%s250 + $0x100] sm:$0xff] %v842
        %880 = vst [vmem:[%s250 + $0x108] sm:$0xff] %v843
        %881 = vst [vmem:[%s250 + $0x110] sm:$0xff] %v844
        %882 = vst [vmem:[%s250 + $0x118] sm:$0xff] %v845
        %883 = vst [vmem:[%s250 + $0x120] sm:$0xff] %v846
        %s884 = sand.u32 %s104, 1
        %s885 = scalar_lea.sflag [#allocation4], %s884
        %s886 = sand.u32 %s104, 1
        %s887 = smul.addr %s886, 296
        %s888 = scalar_lea.vmem [#allocation8], %s887
        // Predicated region
        $region45: #{tpu_custom_call.1} parent=31 // pred_check
          %p889 = pneg %p114
        $region46: #{tpu_custom_call.1} parent=31 // pred_check_branch
          %891 = sbr.rel (%p889) target = $region48
        $region47: #{tpu_custom_call.1} parent=31 // pred_region
          %s892 = smul.u32 37, %s23
          %s893 = ssub.s32 38, %s892
          %p894 = scmp.lt.s32.totalorder %s893, 37
          %s895 = scalar_select %p894, %s893, 37
          %s896 = smul.u32 8, %s895
          %s897 = ssub.s32 296, %s896
          %s898 = sshll.u32 %s897, 4
          %899 = vsyncadd %s885, %s898
          %p900 = scmp.ne.s32.totalorder 0, %s896
          %s901 = smul.addr %s892, 8
          %s902 = scalar_lea.hbm %s3, %s901
          %s903 = smul.u32 8, %s895
          %s904 = sshll.u32 %s888, 4
          %s905 = int_to_ptr.vmem [resolvable:$true] %s904
          %s906 = sshll.u32 %s902, 4
          %s907 = int_to_ptr.hbm [resolvable:$true] %s906
          %s908 = sshll.u32 %s903, 4
          %912 = dma.vmem_to_hbm [thread:$0]  (%p900), %s905, %s908, %s907, %s885, 128, 128, 8
        $region48: #{tpu_custom_call.1} parent=31 // pred_fallthru
          _
      $region32: #{tpu_custom_call.1} parent=5 // pred_fallthru
        _
      %p913 = scmp.le.s32.totalorder 2, %s18
      // Predicated region
      $region49: #{tpu_custom_call.1} parent=5 // pred_check
        %p914 = pneg %p913
      $region50: #{tpu_custom_call.1} parent=5 // pred_check_branch
        %916 = sbr.rel (%p914) target = $region52
      $region51: #{tpu_custom_call.1} parent=5 // pred_region
        %s917 = ssub.s32 %s18, 2
        // Predicated region
        $region53: #{tpu_custom_call.1} parent=51 // pred_check
          %p918 = pneg %p120
        $region54: #{tpu_custom_call.1} parent=51 // pred_check_branch
          %920 = sbr.rel (%p918) target = $region56
        $region55: #{tpu_custom_call.1} parent=51 // pred_region
          %s921 = sand.u32 %s105, 1
          %s922 = scalar_lea.sflag [#allocation4], %s921
          %s923 = sand.u32 %s105, 1
          %s924 = smul.addr %s923, 296
          %s925 = scalar_lea.vmem [#allocation8], %s924
          %927 = dma.done %s922, 4736
        $region56: #{tpu_custom_call.1} parent=51 // pred_fallthru
          _
      $region52: #{tpu_custom_call.1} parent=5 // pred_fallthru
        _
    $region6: #{tpu_custom_call.1} parent=1 // loop_footer
      %s22 = sadd.s32 1, %s18
    $region7: #{tpu_custom_call.1} parent=1 // loop_footer_branch
      %17 = sbr.rel target = $region3
    $region8: #{tpu_custom_call.1} parent=1 // loop_exit
      _
    %928 = vsyncpa [#allocation3], 1
    %s929 = scalar_lea.sflag [#allocation3], 1
    %930 = vsyncpa %s929, 1
    %931 = vsyncpa [#allocation6], 1
    %s932 = scalar_lea.sflag [#allocation6], 1
    %933 = vsyncpa %s932, 1
    %934 = vsyncpa [#allocation4], 1
    %s935 = scalar_lea.sflag [#allocation4], 1
    %936 = vsyncpa %s935, 1

</llo_original>
